<compile_context>
chip_gen: v7x
topology: tpu7x:2x2x1
jax: 0.10.0
libtpu: 0.0.40
codegen_flags: <defaults>
</compile_context>

<pallas_src>
import functools

import jax
import jax.numpy as jnp
import numpy as np
from jax import lax
from jax.experimental import pallas as pl
from jax.experimental.pallas import tpu as pltpu


def check_aliquot(n, d):
    assert n % d == 0, f"{n} must be divisible by {d}"


def _round_up(n, m):
    return ((n + m - 1) // m) * m


# ----------------------------------------------------------------------------
# Fused Pallas kernel: 3 x (conv3x3 pad=1 + bias + PReLU), concat on channels.
# ----------------------------------------------------------------------------
def _conv_block_kernel(x_ref, w1_ref, w2_ref, w3_ref,
                       b1_ref, b2_ref, b3_ref,
                       a1_ref, a2_ref, a3_ref,
                       mask_ref, o_ref, *, wp):
    # x_ref    : (1, Cin_p, P) f32   zero-ringed, channel-padded input canvas
    # w*_ref   : (mid, 9*Cin)  bf16  im2col-flattened weights (tap-major rows)
    # b*/a*_ref: (mid, 1)      f32   bias / PReLU slope (broadcast along lanes)
    # mask_ref : (1, P)        f32   1 on interior pixels, 0 on the pad ring
    # o_ref    : (1, 3*mid, P) f32   concatenated x1|x2|x3 canvases (lane-dense)
    mask = mask_ref[...]

    def shift(a, r):
        # b[:, p] = a[:, p + r], zero fill at the ends (static r, lane axis).
        if r == 0:
            return a
        c, p = a.shape
        z = jnp.zeros((c, abs(r)), a.dtype)
        if r > 0:
            return jnp.concatenate([a[:, r:], z], axis=1)
        return jnp.concatenate([z, a[:, :p + r]], axis=1)

    def layer(canvas, w_ref, b_ref, a_ref):
        # canvas: (Cin, P) f32 with zero ring  ->  (mid, P) f32 with zero ring.
        taps = [shift(canvas, dy * wp + dx)
                for dy in (-1, 0, 1) for dx in (-1, 0, 1)]
        patch = jnp.concatenate(taps, axis=0).astype(jnp.bfloat16)   # (9*Cin, P)
        y = jnp.dot(w_ref[...], patch,
                    preferred_element_type=jnp.float32)              # (mid, P)
        y = y + b_ref[...]                                           # bias (f32)
        y = jnp.where(y >= 0.0, y, y * a_ref[...])                   # PReLU (f32)
        return y * mask                                              # re-zero ring

    x1 = layer(x_ref[0], w1_ref, b1_ref, a1_ref)
    x2 = layer(x1,       w2_ref, b2_ref, a2_ref)
    x3 = layer(x2,       w3_ref, b3_ref, a3_ref)
    o_ref[0] = jnp.concatenate([x1, x2, x3], axis=0)                 # torch.cat dim=1


# ----------------------------------------------------------------------------
# Wrapper
# ----------------------------------------------------------------------------
def _prep_weight(w_hwio, cin_pad):
    """(3,3,cin,cout) HWIO -> (cout, 9*cin_pad) bf16, tap-major (dy,dx,cin) rows."""
    cin, cout = w_hwio.shape[2], w_hwio.shape[3]
    w = jnp.pad(w_hwio, ((0, 0), (0, 0), (0, cin_pad - cin), (0, 0)))
    return w.reshape(9 * cin_pad, cout).T.astype(jnp.bfloat16)


def conv_block_forward(x_nchw, params):
    """Equivalent of ConvBlock.forward (NCHW in, NCHW out)."""
    N, cin, H, W = x_nchw.shape
    mid = params["b1"].shape[0]
    hp, wp = H + 2, W + 2
    P = hp * wp
    cin_p = _round_up(cin, 8)          # sublane-align the layer-1 channel axis

    # One-time input prep (XLA): zero pad ring + channel pad + channel-major flatten.
    xc = jnp.pad(x_nchw, ((0, 0), (0, cin_p - cin), (1, 1), (1, 1)))
    xc = xc.reshape(N, cin_p, P).astype(jnp.float32)

    # Interior mask: 1 on real pixels, 0 on the padding ring.
    rows = (jnp.arange(hp) >= 1) & (jnp.arange(hp) <= H)
    cols = (jnp.arange(wp) >= 1) & (jnp.arange(wp) <= W)
    mask = (rows[:, None] & cols[None, :]).reshape(1, P).astype(jnp.float32)

    w1f = _prep_weight(params["w1"], cin_p)
    w2f = _prep_weight(params["w2"], mid)
    w3f = _prep_weight(params["w3"], mid)
    col = lambda v: v.reshape(mid, 1).astype(jnp.float32)

    out = pl.pallas_call(
        functools.partial(_conv_block_kernel, wp=wp),
        out_shape=jax.ShapeDtypeStruct((N, 3 * mid, P), jnp.float32),
        grid=(N,),
        in_specs=[
            pl.BlockSpec((1, cin_p, P), lambda n: (n, 0, 0)),
            pl.BlockSpec(w1f.shape, lambda n: (0, 0)),
            pl.BlockSpec(w2f.shape, lambda n: (0, 0)),
            pl.BlockSpec(w3f.shape, lambda n: (0, 0)),
            pl.BlockSpec((mid, 1), lambda n: (0, 0)),
            pl.BlockSpec((mid, 1), lambda n: (0, 0)),
            pl.BlockSpec((mid, 1), lambda n: (0, 0)),
            pl.BlockSpec((mid, 1), lambda n: (0, 0)),
            pl.BlockSpec((mid, 1), lambda n: (0, 0)),
            pl.BlockSpec((mid, 1), lambda n: (0, 0)),
            pl.BlockSpec((1, P), lambda n: (0, 0)),
        ],
        out_specs=pl.BlockSpec((1, 3 * mid, P), lambda n: (n, 0, 0)),
        compiler_params=pltpu.CompilerParams(
            dimension_semantics=("parallel",),
            vmem_limit_bytes=16 * 1024 * 1024,   # derived: per-step use ~0.1 MiB
        ),
    )(xc, w1f, w2f, w3f,
      col(params["b1"]), col(params["b2"]), col(params["b3"]),
      col(params["a1"]), col(params["a2"]), col(params["a3"]),
      mask)

    # Lane-dense (N, 3*mid, P) canvases -> NCHW interior: reshape + slice only.
    out = out.reshape(N, 3 * mid, hp, wp)[:, :, 1:H + 1, 1:W + 1]
    return out


# ----------------------------------------------------------------------------
# Parameter init (PyTorch-style conv bounds; PReLU slopes per channel)
# ----------------------------------------------------------------------------
def init_conv_block(key, in_ch, out_ch):
    check_aliquot(out_ch, 3)
    mid_ch = out_ch // 3
    keys = jax.random.split(key, 9)
    params = {}
    cin = in_ch
    for i in (1, 2, 3):
        kw, kb, ka = keys[3 * (i - 1):3 * i]
        fan_in = cin * 9
        bound = 1.0 / np.sqrt(fan_in)
        params[f"w{i}"] = jax.random.uniform(kw, (3, 3, cin, mid_ch), jnp.float32, -bound, bound)
        params[f"b{i}"] = jax.random.uniform(kb, (mid_ch,), jnp.float32, -bound, bound)
        params[f"a{i}"] = jax.random.uniform(ka, (mid_ch,), jnp.float32, 0.05, 0.45)
        cin = mid_ch
    return params


# ----------------------------------------------------------------------------
# Pure-JAX references
# ----------------------------------------------------------------------------
def _ref_conv3x3_prelu(x, w, b, a, *, cast_bf16):
    if cast_bf16:  # mirror kernel numerics: bf16 MXU inputs, f32 accumulation
        x = x.astype(jnp.bfloat16)
        w = w.astype(jnp.bfloat16)
    y = lax.conv_general_dilated(
        x, w, (1, 1), ((1, 1), (1, 1)),
        dimension_numbers=("NHWC", "HWIO", "NHWC"),
        preferred_element_type=jnp.float32)
    y = y + b[None, None, None, :]
    return jnp.where(y >= 0.0, y, y * a[None, None, None, :])


def _ref_conv_block(x_nchw, params, *, cast_bf16):
    x = jnp.transpose(x_nchw, (0, 2, 3, 1))
    x1 = _ref_conv3x3_prelu(x,  params["w1"], params["b1"], params["a1"], cast_bf16=cast_bf16)
    x2 = _ref_conv3x3_prelu(x1, params["w2"], params["b2"], params["a2"], cast_bf16=cast_bf16)
    x3 = _ref_conv3x3_prelu(x2, params["w3"], params["b3"], params["a3"], cast_bf16=cast_bf16)
    out = jnp.concatenate([x1, x2, x3], axis=-1)
    return jnp.transpose(out, (0, 3, 1, 2))


if __name__ == "__main__":
    N, in_ch, H, W = 2, 4, 16, 16
    out_ch = 24                      # divisible by 3 -> mid_ch = 8

    root = jax.random.PRNGKey(0)
    kx, kp = jax.random.split(root)
    x = jax.random.normal(kx, (N, in_ch, H, W), dtype=jnp.float32)
    params = init_conv_block(kp, in_ch, out_ch)

    out = jax.block_until_ready(conv_block_forward(x, params))
    assert out.shape == (N, out_ch, H, W)

    # Primary correctness check: reference with identical numerics
    # (bf16 MXU inputs, f32 accumulation / epilogue).
    ref_bf16 = _ref_conv_block(x, params, cast_bf16=True)
    np.testing.assert_allclose(np.asarray(out), np.asarray(ref_bf16),
                               rtol=5e-3, atol=5e-3)

    # Sanity check vs the pure-f32 module semantics (bf16 rounding only).
    ref_f32 = _ref_conv_block(x, params, cast_bf16=False)
    np.testing.assert_allclose(np.asarray(out), np.asarray(ref_f32),
                               rtol=5e-2, atol=5e-2)

    print("KERNEL_OK")
</pallas_src>

<mosaic_0001>
module attributes {stable_mosaic.version = 11 : i64} {
  func.func @_conv_block_kernel(%arg0: i32, %arg1: memref<1x8x324xf32, #tpu.memory_space<vmem>>, %arg2: memref<8x72xbf16, #tpu.memory_space<vmem>>, %arg3: memref<8x72xbf16, #tpu.memory_space<vmem>>, %arg4: memref<8x72xbf16, #tpu.memory_space<vmem>>, %arg5: memref<8x1xf32, #tpu.memory_space<vmem>>, %arg6: memref<8x1xf32, #tpu.memory_space<vmem>>, %arg7: memref<8x1xf32, #tpu.memory_space<vmem>>, %arg8: memref<8x1xf32, #tpu.memory_space<vmem>>, %arg9: memref<8x1xf32, #tpu.memory_space<vmem>>, %arg10: memref<8x1xf32, #tpu.memory_space<vmem>>, %arg11: memref<1x324xf32, #tpu.memory_space<vmem>>, %arg12: memref<1x24x324xf32, #tpu.memory_space<vmem>>) attributes {dimension_semantics = [#tpu.dimension_semantics<parallel>], iteration_bounds = array<i64: 2>, scalar_prefetch = 0 : i64, scratch_operands = 0 : i64, tpu.core_type = #tpu.core_type<tc>, window_params = [{transform_indices = @transform_0, window_bounds = array<i64: 1, 8, 324>}, {pipeline_mode = #tpu.pipeline_mode<synchronous>, transform_indices = @transform_1, window_bounds = array<i64: 8, 72>}, {pipeline_mode = #tpu.pipeline_mode<synchronous>, transform_indices = @transform_2, window_bounds = array<i64: 8, 72>}, {pipeline_mode = #tpu.pipeline_mode<synchronous>, transform_indices = @transform_3, window_bounds = array<i64: 8, 72>}, {pipeline_mode = #tpu.pipeline_mode<synchronous>, transform_indices = @transform_4, window_bounds = array<i64: 8, 1>}, {pipeline_mode = #tpu.pipeline_mode<synchronous>, transform_indices = @transform_5, window_bounds = array<i64: 8, 1>}, {pipeline_mode = #tpu.pipeline_mode<synchronous>, transform_indices = @transform_6, window_bounds = array<i64: 8, 1>}, {pipeline_mode = #tpu.pipeline_mode<synchronous>, transform_indices = @transform_7, window_bounds = array<i64: 8, 1>}, {pipeline_mode = #tpu.pipeline_mode<synchronous>, transform_indices = @transform_8, window_bounds = array<i64: 8, 1>}, {pipeline_mode = #tpu.pipeline_mode<synchronous>, transform_indices = @transform_9, window_bounds = array<i64: 8, 1>}, {pipeline_mode = #tpu.pipeline_mode<synchronous>, transform_indices = @transform_10, window_bounds = array<i64: 1, 324>}, {transform_indices = @transform_11, window_bounds = array<i64: 1, 24, 324>}]} {
    %c0 = arith.constant 0 : index
    %c0_0 = arith.constant 0 : index
    %0 = vector.load %arg11[%c0, %c0_0] : memref<1x324xf32, #tpu.memory_space<vmem>>, vector<1x324xf32>
    %c0_1 = arith.constant 0 : index
    %c0_2 = arith.constant 0 : index
    %c0_3 = arith.constant 0 : index
    %1 = vector.load %arg1[%c0_1, %c0_2, %c0_3] : memref<1x8x324xf32, #tpu.memory_space<vmem>>, vector<1x8x324xf32>
    %2 = vector.shape_cast %1 : vector<1x8x324xf32> to vector<8x324xf32>
    %cst = arith.constant 0.000000e+00 : f32
    %3 = vector.broadcast %cst : f32 to vector<8x19xf32>
    %4 = vector.extract_strided_slice %2 {offsets = [0, 0], sizes = [8, 305], strides = [1, 1]} : vector<8x324xf32> to vector<8x305xf32>
    %5 = tpu.concatenate %3, %4 in 1 : vector<8x19xf32>, vector<8x305xf32> -> vector<8x324xf32>
    %cst_4 = arith.constant 0.000000e+00 : f32
    %6 = vector.broadcast %cst_4 : f32 to vector<8x18xf32>
    %7 = vector.extract_strided_slice %2 {offsets = [0, 0], sizes = [8, 306], strides = [1, 1]} : vector<8x324xf32> to vector<8x306xf32>
    %8 = tpu.concatenate %6, %7 in 1 : vector<8x18xf32>, vector<8x306xf32> -> vector<8x324xf32>
    %cst_5 = arith.constant 0.000000e+00 : f32
    %9 = vector.broadcast %cst_5 : f32 to vector<8x17xf32>
    %10 = vector.extract_strided_slice %2 {offsets = [0, 0], sizes = [8, 307], strides = [1, 1]} : vector<8x324xf32> to vector<8x307xf32>
    %11 = tpu.concatenate %9, %10 in 1 : vector<8x17xf32>, vector<8x307xf32> -> vector<8x324xf32>
    %cst_6 = arith.constant 0.000000e+00 : f32
    %12 = vector.broadcast %cst_6 : f32 to vector<8x1xf32>
    %13 = vector.extract_strided_slice %2 {offsets = [0, 0], sizes = [8, 323], strides = [1, 1]} : vector<8x324xf32> to vector<8x323xf32>
    %14 = tpu.concatenate %12, %13 in 1 : vector<8x1xf32>, vector<8x323xf32> -> vector<8x324xf32>
    %cst_7 = arith.constant 0.000000e+00 : f32
    %15 = vector.broadcast %cst_7 : f32 to vector<8x1xf32>
    %16 = vector.extract_strided_slice %2 {offsets = [0, 1], sizes = [8, 323], strides = [1, 1]} : vector<8x324xf32> to vector<8x323xf32>
    %17 = tpu.concatenate %16, %15 in 1 : vector<8x323xf32>, vector<8x1xf32> -> vector<8x324xf32>
    %cst_8 = arith.constant 0.000000e+00 : f32
    %18 = vector.broadcast %cst_8 : f32 to vector<8x17xf32>
    %19 = vector.extract_strided_slice %2 {offsets = [0, 17], sizes = [8, 307], strides = [1, 1]} : vector<8x324xf32> to vector<8x307xf32>
    %20 = tpu.concatenate %19, %18 in 1 : vector<8x307xf32>, vector<8x17xf32> -> vector<8x324xf32>
    %cst_9 = arith.constant 0.000000e+00 : f32
    %21 = vector.broadcast %cst_9 : f32 to vector<8x18xf32>
    %22 = vector.extract_strided_slice %2 {offsets = [0, 18], sizes = [8, 306], strides = [1, 1]} : vector<8x324xf32> to vector<8x306xf32>
    %23 = tpu.concatenate %22, %21 in 1 : vector<8x306xf32>, vector<8x18xf32> -> vector<8x324xf32>
    %cst_10 = arith.constant 0.000000e+00 : f32
    %24 = vector.broadcast %cst_10 : f32 to vector<8x19xf32>
    %25 = vector.extract_strided_slice %2 {offsets = [0, 19], sizes = [8, 305], strides = [1, 1]} : vector<8x324xf32> to vector<8x305xf32>
    %26 = tpu.concatenate %25, %24 in 1 : vector<8x305xf32>, vector<8x19xf32> -> vector<8x324xf32>
    %27 = tpu.concatenate %5, %8, %11, %14, %2, %17, %20, %23, %26 in 0 : vector<8x324xf32>, vector<8x324xf32>, vector<8x324xf32>, vector<8x324xf32>, vector<8x324xf32>, vector<8x324xf32>, vector<8x324xf32>, vector<8x324xf32>, vector<8x324xf32> -> vector<72x324xf32>
    %28 = arith.truncf %27 : vector<72x324xf32> to vector<72x324xbf16>
    %c0_11 = arith.constant 0 : index
    %c0_12 = arith.constant 0 : index
    %29 = vector.load %arg2[%c0_11, %c0_12] : memref<8x72xbf16, #tpu.memory_space<vmem>>, vector<8x72xbf16>
    %cst_13 = arith.constant dense<0.000000e+00> : vector<8x324xf32>
    %30 = tpu.matmul %29, %28, %cst_13 {dimension_numbers = #tpu.dot_dimension_numbers<[1], [0], [0], [1], [0, 0, 1, 1], [], []>} : vector<8x72xbf16>, vector<72x324xbf16>, vector<8x324xf32> -> vector<8x324xf32>
    %c0_14 = arith.constant 0 : index
    %c0_15 = arith.constant 0 : index
    %31 = vector.load %arg5[%c0_14, %c0_15] : memref<8x1xf32, #tpu.memory_space<vmem>>, vector<8x1xf32>
    %32 = vector.broadcast %31 : vector<8x1xf32> to vector<8x324xf32>
    %33 = arith.addf %30, %32 : vector<8x324xf32>
    %cst_16 = arith.constant 0.000000e+00 : f32
    %34 = vector.broadcast %cst_16 : f32 to vector<8x324xf32>
    %35 = arith.cmpf oge, %33, %34 : vector<8x324xf32>
    %c0_17 = arith.constant 0 : index
    %c0_18 = arith.constant 0 : index
    %36 = vector.load %arg8[%c0_17, %c0_18] : memref<8x1xf32, #tpu.memory_space<vmem>>, vector<8x1xf32>
    %37 = vector.broadcast %36 : vector<8x1xf32> to vector<8x324xf32>
    %38 = arith.mulf %33, %37 : vector<8x324xf32>
    %39 = arith.select %35, %33, %38 : vector<8x324xi1>, vector<8x324xf32>
    %40 = vector.broadcast %0 : vector<1x324xf32> to vector<8x324xf32>
    %41 = arith.mulf %39, %40 : vector<8x324xf32>
    %cst_19 = arith.constant 0.000000e+00 : f32
    %42 = vector.broadcast %cst_19 : f32 to vector<8x19xf32>
    %43 = vector.extract_strided_slice %41 {offsets = [0, 0], sizes = [8, 305], strides = [1, 1]} : vector<8x324xf32> to vector<8x305xf32>
    %44 = tpu.concatenate %42, %43 in 1 : vector<8x19xf32>, vector<8x305xf32> -> vector<8x324xf32>
    %cst_20 = arith.constant 0.000000e+00 : f32
    %45 = vector.broadcast %cst_20 : f32 to vector<8x18xf32>
    %46 = vector.extract_strided_slice %41 {offsets = [0, 0], sizes = [8, 306], strides = [1, 1]} : vector<8x324xf32> to vector<8x306xf32>
    %47 = tpu.concatenate %45, %46 in 1 : vector<8x18xf32>, vector<8x306xf32> -> vector<8x324xf32>
    %cst_21 = arith.constant 0.000000e+00 : f32
    %48 = vector.broadcast %cst_21 : f32 to vector<8x17xf32>
    %49 = vector.extract_strided_slice %41 {offsets = [0, 0], sizes = [8, 307], strides = [1, 1]} : vector<8x324xf32> to vector<8x307xf32>
    %50 = tpu.concatenate %48, %49 in 1 : vector<8x17xf32>, vector<8x307xf32> -> vector<8x324xf32>
    %cst_22 = arith.constant 0.000000e+00 : f32
    %51 = vector.broadcast %cst_22 : f32 to vector<8x1xf32>
    %52 = vector.extract_strided_slice %41 {offsets = [0, 0], sizes = [8, 323], strides = [1, 1]} : vector<8x324xf32> to vector<8x323xf32>
    %53 = tpu.concatenate %51, %52 in 1 : vector<8x1xf32>, vector<8x323xf32> -> vector<8x324xf32>
    %cst_23 = arith.constant 0.000000e+00 : f32
    %54 = vector.broadcast %cst_23 : f32 to vector<8x1xf32>
    %55 = vector.extract_strided_slice %41 {offsets = [0, 1], sizes = [8, 323], strides = [1, 1]} : vector<8x324xf32> to vector<8x323xf32>
    %56 = tpu.concatenate %55, %54 in 1 : vector<8x323xf32>, vector<8x1xf32> -> vector<8x324xf32>
    %cst_24 = arith.constant 0.000000e+00 : f32
    %57 = vector.broadcast %cst_24 : f32 to vector<8x17xf32>
    %58 = vector.extract_strided_slice %41 {offsets = [0, 17], sizes = [8, 307], strides = [1, 1]} : vector<8x324xf32> to vector<8x307xf32>
    %59 = tpu.concatenate %58, %57 in 1 : vector<8x307xf32>, vector<8x17xf32> -> vector<8x324xf32>
    %cst_25 = arith.constant 0.000000e+00 : f32
    %60 = vector.broadcast %cst_25 : f32 to vector<8x18xf32>
    %61 = vector.extract_strided_slice %41 {offsets = [0, 18], sizes = [8, 306], strides = [1, 1]} : vector<8x324xf32> to vector<8x306xf32>
    %62 = tpu.concatenate %61, %60 in 1 : vector<8x306xf32>, vector<8x18xf32> -> vector<8x324xf32>
    %cst_26 = arith.constant 0.000000e+00 : f32
    %63 = vector.broadcast %cst_26 : f32 to vector<8x19xf32>
    %64 = vector.extract_strided_slice %41 {offsets = [0, 19], sizes = [8, 305], strides = [1, 1]} : vector<8x324xf32> to vector<8x305xf32>
    %65 = tpu.concatenate %64, %63 in 1 : vector<8x305xf32>, vector<8x19xf32> -> vector<8x324xf32>
    %66 = tpu.concatenate %44, %47, %50, %53, %41, %56, %59, %62, %65 in 0 : vector<8x324xf32>, vector<8x324xf32>, vector<8x324xf32>, vector<8x324xf32>, vector<8x324xf32>, vector<8x324xf32>, vector<8x324xf32>, vector<8x324xf32>, vector<8x324xf32> -> vector<72x324xf32>
    %67 = arith.truncf %66 : vector<72x324xf32> to vector<72x324xbf16>
    %c0_27 = arith.constant 0 : index
    %c0_28 = arith.constant 0 : index
    %68 = vector.load %arg3[%c0_27, %c0_28] : memref<8x72xbf16, #tpu.memory_space<vmem>>, vector<8x72xbf16>
    %cst_29 = arith.constant dense<0.000000e+00> : vector<8x324xf32>
    %69 = tpu.matmul %68, %67, %cst_29 {dimension_numbers = #tpu.dot_dimension_numbers<[1], [0], [0], [1], [0, 0, 1, 1], [], []>} : vector<8x72xbf16>, vector<72x324xbf16>, vector<8x324xf32> -> vector<8x324xf32>
    %c0_30 = arith.constant 0 : index
    %c0_31 = arith.constant 0 : index
    %70 = vector.load %arg6[%c0_30, %c0_31] : memref<8x1xf32, #tpu.memory_space<vmem>>, vector<8x1xf32>
    %71 = vector.broadcast %70 : vector<8x1xf32> to vector<8x324xf32>
    %72 = arith.addf %69, %71 : vector<8x324xf32>
    %cst_32 = arith.constant 0.000000e+00 : f32
    %73 = vector.broadcast %cst_32 : f32 to vector<8x324xf32>
    %74 = arith.cmpf oge, %72, %73 : vector<8x324xf32>
    %c0_33 = arith.constant 0 : index
    %c0_34 = arith.constant 0 : index
    %75 = vector.load %arg9[%c0_33, %c0_34] : memref<8x1xf32, #tpu.memory_space<vmem>>, vector<8x1xf32>
    %76 = vector.broadcast %75 : vector<8x1xf32> to vector<8x324xf32>
    %77 = arith.mulf %72, %76 : vector<8x324xf32>
    %78 = arith.select %74, %72, %77 : vector<8x324xi1>, vector<8x324xf32>
    %79 = vector.broadcast %0 : vector<1x324xf32> to vector<8x324xf32>
    %80 = arith.mulf %78, %79 : vector<8x324xf32>
    %cst_35 = arith.constant 0.000000e+00 : f32
    %81 = vector.broadcast %cst_35 : f32 to vector<8x19xf32>
    %82 = vector.extract_strided_slice %80 {offsets = [0, 0], sizes = [8, 305], strides = [1, 1]} : vector<8x324xf32> to vector<8x305xf32>
    %83 = tpu.concatenate %81, %82 in 1 : vector<8x19xf32>, vector<8x305xf32> -> vector<8x324xf32>
    %cst_36 = arith.constant 0.000000e+00 : f32
    %84 = vector.broadcast %cst_36 : f32 to vector<8x18xf32>
    %85 = vector.extract_strided_slice %80 {offsets = [0, 0], sizes = [8, 306], strides = [1, 1]} : vector<8x324xf32> to vector<8x306xf32>
    %86 = tpu.concatenate %84, %85 in 1 : vector<8x18xf32>, vector<8x306xf32> -> vector<8x324xf32>
    %cst_37 = arith.constant 0.000000e+00 : f32
    %87 = vector.broadcast %cst_37 : f32 to vector<8x17xf32>
    %88 = vector.extract_strided_slice %80 {offsets = [0, 0], sizes = [8, 307], strides = [1, 1]} : vector<8x324xf32> to vector<8x307xf32>
    %89 = tpu.concatenate %87, %88 in 1 : vector<8x17xf32>, vector<8x307xf32> -> vector<8x324xf32>
    %cst_38 = arith.constant 0.000000e+00 : f32
    %90 = vector.broadcast %cst_38 : f32 to vector<8x1xf32>
    %91 = vector.extract_strided_slice %80 {offsets = [0, 0], sizes = [8, 323], strides = [1, 1]} : vector<8x324xf32> to vector<8x323xf32>
    %92 = tpu.concatenate %90, %91 in 1 : vector<8x1xf32>, vector<8x323xf32> -> vector<8x324xf32>
    %cst_39 = arith.constant 0.000000e+00 : f32
    %93 = vector.broadcast %cst_39 : f32 to vector<8x1xf32>
    %94 = vector.extract_strided_slice %80 {offsets = [0, 1], sizes = [8, 323], strides = [1, 1]} : vector<8x324xf32> to vector<8x323xf32>
    %95 = tpu.concatenate %94, %93 in 1 : vector<8x323xf32>, vector<8x1xf32> -> vector<8x324xf32>
    %cst_40 = arith.constant 0.000000e+00 : f32
    %96 = vector.broadcast %cst_40 : f32 to vector<8x17xf32>
    %97 = vector.extract_strided_slice %80 {offsets = [0, 17], sizes = [8, 307], strides = [1, 1]} : vector<8x324xf32> to vector<8x307xf32>
    %98 = tpu.concatenate %97, %96 in 1 : vector<8x307xf32>, vector<8x17xf32> -> vector<8x324xf32>
    %cst_41 = arith.constant 0.000000e+00 : f32
    %99 = vector.broadcast %cst_41 : f32 to vector<8x18xf32>
    %100 = vector.extract_strided_slice %80 {offsets = [0, 18], sizes = [8, 306], strides = [1, 1]} : vector<8x324xf32> to vector<8x306xf32>
    %101 = tpu.concatenate %100, %99 in 1 : vector<8x306xf32>, vector<8x18xf32> -> vector<8x324xf32>
    %cst_42 = arith.constant 0.000000e+00 : f32
    %102 = vector.broadcast %cst_42 : f32 to vector<8x19xf32>
    %103 = vector.extract_strided_slice %80 {offsets = [0, 19], sizes = [8, 305], strides = [1, 1]} : vector<8x324xf32> to vector<8x305xf32>
    %104 = tpu.concatenate %103, %102 in 1 : vector<8x305xf32>, vector<8x19xf32> -> vector<8x324xf32>
    %105 = tpu.concatenate %83, %86, %89, %92, %80, %95, %98, %101, %104 in 0 : vector<8x324xf32>, vector<8x324xf32>, vector<8x324xf32>, vector<8x324xf32>, vector<8x324xf32>, vector<8x324xf32>, vector<8x324xf32>, vector<8x324xf32>, vector<8x324xf32> -> vector<72x324xf32>
    %106 = arith.truncf %105 : vector<72x324xf32> to vector<72x324xbf16>
    %c0_43 = arith.constant 0 : index
    %c0_44 = arith.constant 0 : index
    %107 = vector.load %arg4[%c0_43, %c0_44] : memref<8x72xbf16, #tpu.memory_space<vmem>>, vector<8x72xbf16>
    %cst_45 = arith.constant dense<0.000000e+00> : vector<8x324xf32>
    %108 = tpu.matmul %107, %106, %cst_45 {dimension_numbers = #tpu.dot_dimension_numbers<[1], [0], [0], [1], [0, 0, 1, 1], [], []>} : vector<8x72xbf16>, vector<72x324xbf16>, vector<8x324xf32> -> vector<8x324xf32>
    %c0_46 = arith.constant 0 : index
    %c0_47 = arith.constant 0 : index
    %109 = vector.load %arg7[%c0_46, %c0_47] : memref<8x1xf32, #tpu.memory_space<vmem>>, vector<8x1xf32>
    %110 = vector.broadcast %109 : vector<8x1xf32> to vector<8x324xf32>
    %111 = arith.addf %108, %110 : vector<8x324xf32>
    %cst_48 = arith.constant 0.000000e+00 : f32
    %112 = vector.broadcast %cst_48 : f32 to vector<8x324xf32>
    %113 = arith.cmpf oge, %111, %112 : vector<8x324xf32>
    %c0_49 = arith.constant 0 : index
    %c0_50 = arith.constant 0 : index
    %114 = vector.load %arg10[%c0_49, %c0_50] : memref<8x1xf32, #tpu.memory_space<vmem>>, vector<8x1xf32>
    %115 = vector.broadcast %114 : vector<8x1xf32> to vector<8x324xf32>
    %116 = arith.mulf %111, %115 : vector<8x324xf32>
    %117 = arith.select %113, %111, %116 : vector<8x324xi1>, vector<8x324xf32>
    %118 = vector.broadcast %0 : vector<1x324xf32> to vector<8x324xf32>
    %119 = arith.mulf %117, %118 : vector<8x324xf32>
    %120 = tpu.concatenate %41, %80, %119 in 0 : vector<8x324xf32>, vector<8x324xf32>, vector<8x324xf32> -> vector<24x324xf32>
    %c0_51 = arith.constant 0 : index
    %c0_52 = arith.constant 0 : index
    %c0_53 = arith.constant 0 : index
    %121 = vector.load %arg12[%c0_51, %c0_52, %c0_53] : memref<1x24x324xf32, #tpu.memory_space<vmem>>, vector<1x24x324xf32>
    %122 = vector.shape_cast %121 : vector<1x24x324xf32> to vector<24x324xf32>
    %123 = vector.shape_cast %120 : vector<24x324xf32> to vector<1x24x324xf32>
    tpu.vector_store %arg12[%c0_51, %c0_52, %c0_53], %123 {strides = array<i32>} : memref<1x24x324xf32, #tpu.memory_space<vmem>>, vector<1x24x324xf32>,
    return
  }
  func.func @transform_0(%arg0: i32) -> (i32, i32, i32) {
    %c0_i32 = arith.constant 0 : i32
    %c0_i32_0 = arith.constant 0 : i32
    %c0_i32_1 = arith.constant 0 : i32
    return %arg0, %c0_i32, %c0_i32_0 : i32, i32, i32
  }
  func.func @transform_1(%arg0: i32) -> (i32, i32) {
    %c0_i32 = arith.constant 0 : i32
    %c0_i32_0 = arith.constant 0 : i32
    %c0_i32_1 = arith.constant 0 : i32
    return %c0_i32, %c0_i32_0 : i32, i32
  }
  func.func @transform_2(%arg0: i32) -> (i32, i32) {
    %c0_i32 = arith.constant 0 : i32
    %c0_i32_0 = arith.constant 0 : i32
    %c0_i32_1 = arith.constant 0 : i32
    return %c0_i32, %c0_i32_0 : i32, i32
  }
  func.func @transform_3(%arg0: i32) -> (i32, i32) {
    %c0_i32 = arith.constant 0 : i32
    %c0_i32_0 = arith.constant 0 : i32
    %c0_i32_1 = arith.constant 0 : i32
    return %c0_i32, %c0_i32_0 : i32, i32
  }
  func.func @transform_4(%arg0: i32) -> (i32, i32) {
    %c0_i32 = arith.constant 0 : i32
    %c0_i32_0 = arith.constant 0 : i32
    %c0_i32_1 = arith.constant 0 : i32
    return %c0_i32, %c0_i32_0 : i32, i32
  }
  func.func @transform_5(%arg0: i32) -> (i32, i32) {
    %c0_i32 = arith.constant 0 : i32
    %c0_i32_0 = arith.constant 0 : i32
    %c0_i32_1 = arith.constant 0 : i32
    return %c0_i32, %c0_i32_0 : i32, i32
  }
  func.func @transform_6(%arg0: i32) -> (i32, i32) {
    %c0_i32 = arith.constant 0 : i32
    %c0_i32_0 = arith.constant 0 : i32
    %c0_i32_1 = arith.constant 0 : i32
    return %c0_i32, %c0_i32_0 : i32, i32
  }
  func.func @transform_7(%arg0: i32) -> (i32, i32) {
    %c0_i32 = arith.constant 0 : i32
    %c0_i32_0 = arith.constant 0 : i32
    %c0_i32_1 = arith.constant 0 : i32
    return %c0_i32, %c0_i32_0 : i32, i32
  }
  func.func @transform_8(%arg0: i32) -> (i32, i32) {
    %c0_i32 = arith.constant 0 : i32
    %c0_i32_0 = arith.constant 0 : i32
    %c0_i32_1 = arith.constant 0 : i32
    return %c0_i32, %c0_i32_0 : i32, i32
  }
  func.func @transform_9(%arg0: i32) -> (i32, i32) {
    %c0_i32 = arith.constant 0 : i32
    %c0_i32_0 = arith.constant 0 : i32
    %c0_i32_1 = arith.constant 0 : i32
    return %c0_i32, %c0_i32_0 : i32, i32
  }
  func.func @transform_10(%arg0: i32) -> (i32, i32) {
    %c0_i32 = arith.constant 0 : i32
    %c0_i32_0 = arith.constant 0 : i32
    %c0_i32_1 = arith.constant 0 : i32
    return %c0_i32, %c0_i32_0 : i32, i32
  }
  func.func @transform_11(%arg0: i32) -> (i32, i32, i32) {
    %c0_i32 = arith.constant 0 : i32
    %c0_i32_0 = arith.constant 0 : i32
    %c0_i32_1 = arith.constant 0 : i32
    return %arg0, %c0_i32, %c0_i32_0 : i32, i32, i32
  }
}

</mosaic_0001>

<llo_original>
// kernel: tpu_custom_call.1
$region0: #{tpu_custom_call.1}
  #allocation0 [shape = 'u32[]', space=smem, size = 0x4, offset = 0x4, fixed_abs, tag = 'smem constant byte address 0x4 - core index']
  #allocation1 [shape = 'u32[144,128]{1,0:T(1,128)}', space=vmem, size = 0x12000, scoped, tag = 'internal scratch']
  %s0 = inlined_call_operand.vmem [shape: f32[2,8,324], index: 0, kind: input, shape index: {}]
  %s1 = inlined_call_operand.vmem [shape: bf16[8,72], index: 1, kind: input, shape index: {}]
  %s2 = inlined_call_operand.vmem [shape: bf16[8,72], index: 2, kind: input, shape index: {}]
  %s3 = inlined_call_operand.vmem [shape: bf16[8,72], index: 3, kind: input, shape index: {}]
  %s4 = inlined_call_operand.vmem [shape: f32[8,1], index: 4, kind: input, shape index: {}]
  %s5 = inlined_call_operand.vmem [shape: f32[8,1], index: 5, kind: input, shape index: {}]
  %s6 = inlined_call_operand.vmem [shape: f32[8,1], index: 6, kind: input, shape index: {}]
  %s7 = inlined_call_operand.vmem [shape: f32[8,1], index: 7, kind: input, shape index: {}]
  %s8 = inlined_call_operand.vmem [shape: f32[8,1], index: 8, kind: input, shape index: {}]
  %s9 = inlined_call_operand.vmem [shape: f32[8,1], index: 9, kind: input, shape index: {}]
  %s10 = inlined_call_operand.vmem [shape: f32[1,324], index: 10, kind: input, shape index: {}]
  %s11 = inlined_call_operand.hbm [shape: f32[2,24,324], index: 11, kind: output, shape index: {}]
  %s12 = sld [smem:[#allocation0]]
  $region77: #{tpu_custom_call.1} parent=0
    _
  %s14 = ssub.s32 1, %s12
  %s15 = scalar_select 0, %s14, %s12
  $region1: #{tpu_custom_call.1} parent=0
    #allocation2 [shape = 'u8[73728]{0}', space=vmem, size = 0x12000, scoped, tag = 'output window, operand 0']
    #allocation3 [shape = 's32[2]{0}', space=sflag, size = 0x8, scoped, tag = 'scoped memory for tpu_custom_call.1']
    %16 = vsyncpa [#allocation3], 0
    %s17 = scalar_lea.sflag [#allocation3], 1
    %18 = vsyncpa %s17, 0
    loop: start=0, step=1, limit=4
    $region2: #{tpu_custom_call.1} parent=1 // loop_pre_header
      _
    $region3: #{tpu_custom_call.1} parent=1 // loop_header
      %s20 = sphi 0, %s24
      %p21 = scmp.ge.s32.totalorder %s20, 4
      %s30 = sphi 0, %s32
      %s33 = sphi 0, %s30
      %s34 = sphi 0, %s33
      %s50 = sphi 0, %s34
      %s54 = sphi 0, %s54
      %s56 = sphi 0, %s54
      %s57 = sphi 0, %s56
      %s71 = sphi 0, %s57
      %s75 = sphi 0, %s75
      %s77 = sphi 0, %s75
      %s78 = sphi 0, %s77
      %s92 = sphi 0, %s78
      %s96 = sphi 0, %s96
      %s98 = sphi 0, %s96
      %s99 = sphi 0, %s98
      %s113 = sphi 0, %s99
      %s117 = sphi 0, %s117
      %s119 = sphi 0, %s117
      %s120 = sphi 0, %s119
      %s134 = sphi 0, %s120
      %s138 = sphi 0, %s138
      %s140 = sphi 0, %s138
      %s141 = sphi 0, %s140
      %s155 = sphi 0, %s141
      %s159 = sphi 0, %s159
      %s161 = sphi 0, %s159
      %s162 = sphi 0, %s161
      %s176 = sphi 0, %s162
      %s180 = sphi 0, %s180
      %s182 = sphi 0, %s180
      %s183 = sphi 0, %s182
      %s197 = sphi 0, %s183
      %s201 = sphi 0, %s201
      %s203 = sphi 0, %s201
      %s204 = sphi 0, %s203
      %s218 = sphi 0, %s204
      %s222 = sphi 0, %s222
      %s224 = sphi 0, %s222
      %s225 = sphi 0, %s224
      %s239 = sphi 0, %s225
      %s243 = sphi 0, %s243
      %s245 = sphi 0, %s243
      %s246 = sphi 0, %s245
      %s260 = sphi 0, %s246
      %s266 = sphi 0, %s268
      %s269 = sphi 0, %s266
      %s270 = sphi 0, %s269
      %s286 = sphi 0, %s270
    $region4: #{tpu_custom_call.1} parent=1 // loop_header_branch
      %23 = sbr.rel (%p21) target = $region8
    $region5: #{tpu_custom_call.1} parent=1 // loop_body
      %s25 = ssub.s32 %s20, 1
      %s26 = ssub.s32 %s20, 2
      %s27 = sadd.s32 %s20, 1
      %s28 = ssub.s32 %s20, %s27
      %p29 = scmp.eq.s32.totalorder %s28, 0
      %s31 = sadd.s32 %s30, 1
      %s32 = scalar_select %p29, %s30, %s31
      %p35 = pneg %p29
      %p36 = scmp.eq.s32.totalorder %s20, 1
      %p37 = por %p35, %p36
      %p38 = scmp.ne.s32.totalorder %s30, %s33
      %p39 = scmp.eq.s32.totalorder %s20, 0
      %p40 = por %p38, %p39
      %p41 = scmp.ne.s32.totalorder %s30, %s33
      %p42 = scmp.eq.s32.totalorder %s25, 1
      %p43 = por %p41, %p42
      %p44 = scmp.ne.s32.totalorder %s33, %s34
      %p45 = scmp.eq.s32.totalorder %s25, 0
      %p46 = por %p44, %p45
      %p47 = scmp.ne.s32.totalorder %s33, %s34
      %p48 = scmp.eq.s32.totalorder %s26, 1
      %p49 = por %p47, %p48
      %p51 = scmp.ne.s32.totalorder %s34, %s50
      %p52 = scmp.eq.s32.totalorder %s26, 0
      %p53 = por %p51, %p52
      %s55 = sadd.s32 %s54, 1
      %p58 = scmp.eq.s32.totalorder %s20, 1
      %p59 = scmp.ne.s32.totalorder %s54, %s56
      %p60 = scmp.eq.s32.totalorder %s20, 0
      %p61 = por %p59, %p60
      %p62 = scmp.ne.s32.totalorder %s54, %s56
      %p63 = scmp.eq.s32.totalorder %s25, 1
      %p64 = por %p62, %p63
      %p65 = scmp.ne.s32.totalorder %s56, %s57
      %p66 = scmp.eq.s32.totalorder %s25, 0
      %p67 = por %p65, %p66
      %p68 = scmp.ne.s32.totalorder %s56, %s57
      %p69 = scmp.eq.s32.totalorder %s26, 1
      %p70 = por %p68, %p69
      %p72 = scmp.ne.s32.totalorder %s57, %s71
      %p73 = scmp.eq.s32.totalorder %s26, 0
      %p74 = por %p72, %p73
      %s76 = sadd.s32 %s75, 1
      %p79 = scmp.eq.s32.totalorder %s20, 1
      %p80 = scmp.ne.s32.totalorder %s75, %s77
      %p81 = scmp.eq.s32.totalorder %s20, 0
      %p82 = por %p80, %p81
      %p83 = scmp.ne.s32.totalorder %s75, %s77
      %p84 = scmp.eq.s32.totalorder %s25, 1
      %p85 = por %p83, %p84
      %p86 = scmp.ne.s32.totalorder %s77, %s78
      %p87 = scmp.eq.s32.totalorder %s25, 0
      %p88 = por %p86, %p87
      %p89 = scmp.ne.s32.totalorder %s77, %s78
      %p90 = scmp.eq.s32.totalorder %s26, 1
      %p91 = por %p89, %p90
      %p93 = scmp.ne.s32.totalorder %s78, %s92
      %p94 = scmp.eq.s32.totalorder %s26, 0
      %p95 = por %p93, %p94
      %s97 = sadd.s32 %s96, 1
      %p100 = scmp.eq.s32.totalorder %s20, 1
      %p101 = scmp.ne.s32.totalorder %s96, %s98
      %p102 = scmp.eq.s32.totalorder %s20, 0
      %p103 = por %p101, %p102
      %p104 = scmp.ne.s32.totalorder %s96, %s98
      %p105 = scmp.eq.s32.totalorder %s25, 1
      %p106 = por %p104, %p105
      %p107 = scmp.ne.s32.totalorder %s98, %s99
      %p108 = scmp.eq.s32.totalorder %s25, 0
      %p109 = por %p107, %p108
      %p110 = scmp.ne.s32.totalorder %s98, %s99
      %p111 = scmp.eq.s32.totalorder %s26, 1
      %p112 = por %p110, %p111
      %p114 = scmp.ne.s32.totalorder %s99, %s113
      %p115 = scmp.eq.s32.totalorder %s26, 0
      %p116 = por %p114, %p115
      %s118 = sadd.s32 %s117, 1
      %p121 = scmp.eq.s32.totalorder %s20, 1
      %p122 = scmp.ne.s32.totalorder %s117, %s119
      %p123 = scmp.eq.s32.totalorder %s20, 0
      %p124 = por %p122, %p123
      %p125 = scmp.ne.s32.totalorder %s117, %s119
      %p126 = scmp.eq.s32.totalorder %s25, 1
      %p127 = por %p125, %p126
      %p128 = scmp.ne.s32.totalorder %s119, %s120
      %p129 = scmp.eq.s32.totalorder %s25, 0
      %p130 = por %p128, %p129
      %p131 = scmp.ne.s32.totalorder %s119, %s120
      %p132 = scmp.eq.s32.totalorder %s26, 1
      %p133 = por %p131, %p132
      %p135 = scmp.ne.s32.totalorder %s120, %s134
      %p136 = scmp.eq.s32.totalorder %s26, 0
      %p137 = por %p135, %p136
      %s139 = sadd.s32 %s138, 1
      %p142 = scmp.eq.s32.totalorder %s20, 1
      %p143 = scmp.ne.s32.totalorder %s138, %s140
      %p144 = scmp.eq.s32.totalorder %s20, 0
      %p145 = por %p143, %p144
      %p146 = scmp.ne.s32.totalorder %s138, %s140
      %p147 = scmp.eq.s32.totalorder %s25, 1
      %p148 = por %p146, %p147
      %p149 = scmp.ne.s32.totalorder %s140, %s141
      %p150 = scmp.eq.s32.totalorder %s25, 0
      %p151 = por %p149, %p150
      %p152 = scmp.ne.s32.totalorder %s140, %s141
      %p153 = scmp.eq.s32.totalorder %s26, 1
      %p154 = por %p152, %p153
      %p156 = scmp.ne.s32.totalorder %s141, %s155
      %p157 = scmp.eq.s32.totalorder %s26, 0
      %p158 = por %p156, %p157
      %s160 = sadd.s32 %s159, 1
      %p163 = scmp.eq.s32.totalorder %s20, 1
      %p164 = scmp.ne.s32.totalorder %s159, %s161
      %p165 = scmp.eq.s32.totalorder %s20, 0
      %p166 = por %p164, %p165
      %p167 = scmp.ne.s32.totalorder %s159, %s161
      %p168 = scmp.eq.s32.totalorder %s25, 1
      %p169 = por %p167, %p168
      %p170 = scmp.ne.s32.totalorder %s161, %s162
      %p171 = scmp.eq.s32.totalorder %s25, 0
      %p172 = por %p170, %p171
      %p173 = scmp.ne.s32.totalorder %s161, %s162
      %p174 = scmp.eq.s32.totalorder %s26, 1
      %p175 = por %p173, %p174
      %p177 = scmp.ne.s32.totalorder %s162, %s176
      %p178 = scmp.eq.s32.totalorder %s26, 0
      %p179 = por %p177, %p178
      %s181 = sadd.s32 %s180, 1
      %p184 = scmp.eq.s32.totalorder %s20, 1
      %p185 = scmp.ne.s32.totalorder %s180, %s182
      %p186 = scmp.eq.s32.totalorder %s20, 0
      %p187 = por %p185, %p186
      %p188 = scmp.ne.s32.totalorder %s180, %s182
      %p189 = scmp.eq.s32.totalorder %s25, 1
      %p190 = por %p188, %p189
      %p191 = scmp.ne.s32.totalorder %s182, %s183
      %p192 = scmp.eq.s32.totalorder %s25, 0
      %p193 = por %p191, %p192
      %p194 = scmp.ne.s32.totalorder %s182, %s183
      %p195 = scmp.eq.s32.totalorder %s26, 1
      %p196 = por %p194, %p195
      %p198 = scmp.ne.s32.totalorder %s183, %s197
      %p199 = scmp.eq.s32.totalorder %s26, 0
      %p200 = por %p198, %p199
      %s202 = sadd.s32 %s201, 1
      %p205 = scmp.eq.s32.totalorder %s20, 1
      %p206 = scmp.ne.s32.totalorder %s201, %s203
      %p207 = scmp.eq.s32.totalorder %s20, 0
      %p208 = por %p206, %p207
      %p209 = scmp.ne.s32.totalorder %s201, %s203
      %p210 = scmp.eq.s32.totalorder %s25, 1
      %p211 = por %p209, %p210
      %p212 = scmp.ne.s32.totalorder %s203, %s204
      %p213 = scmp.eq.s32.totalorder %s25, 0
      %p214 = por %p212, %p213
      %p215 = scmp.ne.s32.totalorder %s203, %s204
      %p216 = scmp.eq.s32.totalorder %s26, 1
      %p217 = por %p215, %p216
      %p219 = scmp.ne.s32.totalorder %s204, %s218
      %p220 = scmp.eq.s32.totalorder %s26, 0
      %p221 = por %p219, %p220
      %s223 = sadd.s32 %s222, 1
      %p226 = scmp.eq.s32.totalorder %s20, 1
      %p227 = scmp.ne.s32.totalorder %s222, %s224
      %p228 = scmp.eq.s32.totalorder %s20, 0
      %p229 = por %p227, %p228
      %p230 = scmp.ne.s32.totalorder %s222, %s224
      %p231 = scmp.eq.s32.totalorder %s25, 1
      %p232 = por %p230, %p231
      %p233 = scmp.ne.s32.totalorder %s224, %s225
      %p234 = scmp.eq.s32.totalorder %s25, 0
      %p235 = por %p233, %p234
      %p236 = scmp.ne.s32.totalorder %s224, %s225
      %p237 = scmp.eq.s32.totalorder %s26, 1
      %p238 = por %p236, %p237
      %p240 = scmp.ne.s32.totalorder %s225, %s239
      %p241 = scmp.eq.s32.totalorder %s26, 0
      %p242 = por %p240, %p241
      %s244 = sadd.s32 %s243, 1
      %p247 = scmp.eq.s32.totalorder %s20, 1
      %p248 = scmp.ne.s32.totalorder %s243, %s245
      %p249 = scmp.eq.s32.totalorder %s20, 0
      %p250 = por %p248, %p249
      %p251 = scmp.ne.s32.totalorder %s243, %s245
      %p252 = scmp.eq.s32.totalorder %s25, 1
      %p253 = por %p251, %p252
      %p254 = scmp.ne.s32.totalorder %s245, %s246
      %p255 = scmp.eq.s32.totalorder %s25, 0
      %p256 = por %p254, %p255
      %p257 = scmp.ne.s32.totalorder %s245, %s246
      %p258 = scmp.eq.s32.totalorder %s26, 1
      %p259 = por %p257, %p258
      %p261 = scmp.ne.s32.totalorder %s246, %s260
      %p262 = scmp.eq.s32.totalorder %s26, 0
      %p263 = por %p261, %p262
      %s264 = ssub.s32 %s20, %s27
      %p265 = scmp.eq.s32.totalorder %s264, 0
      %s267 = sadd.s32 %s266, 1
      %s268 = scalar_select %p265, %s266, %s267
      %p271 = pneg %p265
      %p272 = scmp.eq.s32.totalorder %s20, 1
      %p273 = por %p271, %p272
      %p274 = scmp.ne.s32.totalorder %s266, %s269
      %p275 = scmp.eq.s32.totalorder %s20, 0
      %p276 = por %p274, %p275
      %p277 = scmp.ne.s32.totalorder %s266, %s269
      %p278 = scmp.eq.s32.totalorder %s25, 1
      %p279 = por %p277, %p278
      %p280 = scmp.ne.s32.totalorder %s269, %s270
      %p281 = scmp.eq.s32.totalorder %s25, 0
      %p282 = por %p280, %p281
      %p283 = scmp.ne.s32.totalorder %s269, %s270
      %p284 = scmp.eq.s32.totalorder %s26, 1
      %p285 = por %p283, %p284
      %p287 = scmp.ne.s32.totalorder %s270, %s286
      %p288 = scmp.eq.s32.totalorder %s26, 0
      %p289 = por %p287, %p288
      %p290 = scmp.le.s32.totalorder 1, %s20
      %p291 = scmp.lt.s32.totalorder %s20, 3
      %p292 = pnand %p290, %p291
      %p293 = pneg %p292
      // Predicated region
      $region9: #{tpu_custom_call.1} parent=5 // pred_check
        _
      $region10: #{tpu_custom_call.1} parent=5 // pred_check_branch
        %295 = sbr.rel (%p292) target = $region12
      $region11: #{tpu_custom_call.1} parent=5 // pred_region
        %s296 = ssub.s32 %s20, 1
        // Predicated region
        $region13: #{tpu_custom_call.1} parent=11 // pred_check
          %p297 = pneg %p67
        $region14: #{tpu_custom_call.1} parent=11 // pred_check_branch
          %299 = sbr.rel (%p297) target = $region16
        $region15: #{tpu_custom_call.1} parent=11 // pred_region
          _
        $region16: #{tpu_custom_call.1} parent=11 // pred_fallthru
          _
        // Predicated region
        $region17: #{tpu_custom_call.1} parent=11 // pred_check
          %p300 = pneg %p88
        $region18: #{tpu_custom_call.1} parent=11 // pred_check_branch
          %302 = sbr.rel (%p300) target = $region20
        $region19: #{tpu_custom_call.1} parent=11 // pred_region
          _
        $region20: #{tpu_custom_call.1} parent=11 // pred_fallthru
          _
        // Predicated region
        $region21: #{tpu_custom_call.1} parent=11 // pred_check
          %p303 = pneg %p109
        $region22: #{tpu_custom_call.1} parent=11 // pred_check_branch
          %305 = sbr.rel (%p303) target = $region24
        $region23: #{tpu_custom_call.1} parent=11 // pred_region
          _
        $region24: #{tpu_custom_call.1} parent=11 // pred_fallthru
          _
        // Predicated region
        $region25: #{tpu_custom_call.1} parent=11 // pred_check
          %p306 = pneg %p130
        $region26: #{tpu_custom_call.1} parent=11 // pred_check_branch
          %308 = sbr.rel (%p306) target = $region28
        $region27: #{tpu_custom_call.1} parent=11 // pred_region
          _
        $region28: #{tpu_custom_call.1} parent=11 // pred_fallthru
          _
        // Predicated region
        $region29: #{tpu_custom_call.1} parent=11 // pred_check
          %p309 = pneg %p151
        $region30: #{tpu_custom_call.1} parent=11 // pred_check_branch
          %311 = sbr.rel (%p309) target = $region32
        $region31: #{tpu_custom_call.1} parent=11 // pred_region
          _
        $region32: #{tpu_custom_call.1} parent=11 // pred_fallthru
          _
        // Predicated region
        $region33: #{tpu_custom_call.1} parent=11 // pred_check
          %p312 = pneg %p172
        $region34: #{tpu_custom_call.1} parent=11 // pred_check_branch
          %314 = sbr.rel (%p312) target = $region36
        $region35: #{tpu_custom_call.1} parent=11 // pred_region
          _
        $region36: #{tpu_custom_call.1} parent=11 // pred_fallthru
          _
        // Predicated region
        $region37: #{tpu_custom_call.1} parent=11 // pred_check
          %p315 = pneg %p193
        $region38: #{tpu_custom_call.1} parent=11 // pred_check_branch
          %317 = sbr.rel (%p315) target = $region40
        $region39: #{tpu_custom_call.1} parent=11 // pred_region
          _
        $region40: #{tpu_custom_call.1} parent=11 // pred_fallthru
          _
        // Predicated region
        $region41: #{tpu_custom_call.1} parent=11 // pred_check
          %p318 = pneg %p214
        $region42: #{tpu_custom_call.1} parent=11 // pred_check_branch
          %320 = sbr.rel (%p318) target = $region44
        $region43: #{tpu_custom_call.1} parent=11 // pred_region
          _
        $region44: #{tpu_custom_call.1} parent=11 // pred_fallthru
          _
        // Predicated region
        $region45: #{tpu_custom_call.1} parent=11 // pred_check
          %p321 = pneg %p235
        $region46: #{tpu_custom_call.1} parent=11 // pred_check_branch
          %323 = sbr.rel (%p321) target = $region48
        $region47: #{tpu_custom_call.1} parent=11 // pred_region
          _
        $region48: #{tpu_custom_call.1} parent=11 // pred_fallthru
          _
        // Predicated region
        $region49: #{tpu_custom_call.1} parent=11 // pred_check
          %p324 = pneg %p256
        $region50: #{tpu_custom_call.1} parent=11 // pred_check_branch
          %326 = sbr.rel (%p324) target = $region52
        $region51: #{tpu_custom_call.1} parent=11 // pred_region
          _
        $region52: #{tpu_custom_call.1} parent=11 // pred_fallthru
          _
      $region12: #{tpu_custom_call.1} parent=5 // pred_fallthru
        _
      %p327 = scmp.lt.s32.totalorder %s20, 2
      // Predicated region
      $region53: #{tpu_custom_call.1} parent=5 // pred_check
        %p328 = pneg %p327
      $region54: #{tpu_custom_call.1} parent=5 // pred_check_branch
        %330 = sbr.rel (%p328) target = $region56
      $region55: #{tpu_custom_call.1} parent=5 // pred_region
        // Predicated region
        $region57: #{tpu_custom_call.1} parent=55 // pred_check
          %p331 = pneg %p40
        $region58: #{tpu_custom_call.1} parent=55 // pred_check_branch
          %333 = sbr.rel (%p331) target = $region60
        $region59: #{tpu_custom_call.1} parent=55 // pred_region
          %p334 = scmp.lt.s32.totalorder %s20, 1
          %s335 = scalar_select %p334, %s20, 1
          %s336 = smul.addr %s335, 3
          %s337 = smul.addr %s336, 8
          %s338 = scalar_lea.vmem %s0, %s337
        $region60: #{tpu_custom_call.1} parent=55 // pred_fallthru
          _
      $region56: #{tpu_custom_call.1} parent=5 // pred_fallthru
        _
      %p339 = scmp.le.s32.totalorder 1, %s20
      %p340 = scmp.lt.s32.totalorder %s20, 3
      %p341 = pnand %p339, %p340
      %p342 = pneg %p341
      // Predicated region
      $region61: #{tpu_custom_call.1} parent=5 // pred_check
        _
      $region62: #{tpu_custom_call.1} parent=5 // pred_check_branch
        %344 = sbr.rel (%p341) target = $region64
      $region63: #{tpu_custom_call.1} parent=5 // pred_region
        %s345 = ssub.s32 %s20, 1
        %p346 = scmp.lt.s32.totalorder %s25, 1
        %s347 = scalar_select %p346, %s25, 1
        %s348 = smul.addr %s347, 3
        %s349 = smul.addr %s348, 8
        %s350 = scalar_lea.vmem %s0, %s349
        %p351 = pneg %p46
        %p352 = pneg %p43
        %p353 = pneg %p67
        %p354 = pneg %p64
        %p355 = pneg %p88
        %p356 = pneg %p85
        %p357 = pneg %p109
        %p358 = pneg %p106
        %p359 = pneg %p130
        %p360 = pneg %p127
        %p361 = pneg %p151
        %p362 = pneg %p148
        %p363 = pneg %p172
        %p364 = pneg %p169
        %p365 = pneg %p193
        %p366 = pneg %p190
        %p367 = pneg %p214
        %p368 = pneg %p211
        %p369 = pneg %p235
        %p370 = pneg %p232
        %p371 = pneg %p256
        %p372 = pneg %p253
        %p373 = pneg %p282
        %p374 = pneg %p279
        %s375 = sand.u32 %s269, 1
        %s376 = scalar_lea.sflag [#allocation3], %s375
        %s377 = sand.u32 %s269, 1
        %s378 = smul.addr %s377, 72
        %s379 = scalar_lea.vmem [#allocation2], %s378
        %p380 = scmp.lt.s32.totalorder %s25, 1
        %s381 = scalar_select %p380, %s25, 1
        %s382 = smul.addr %s381, 3
        %s383 = smul.addr %s382, 8
        %s384 = scalar_lea.vmem %s0, %s383
        %v386 = vld [vmem:[%s10] sm:$0x7]
        %v387 = vld [vmem:[%s384] sm:$0xff]
        %v388 = vld [vmem:[%s384 + $0x8] sm:$0xff]
        %v389 = vld [vmem:[%s384 + $0x10] sm:$0xff]
        %393 = vrot.lane.b32.xlu0 %v387, 19
        %v394 = vpop.permute.xlu0 %393
        %395 = vrot.lane.b32.xlu0 %v388, 19
        %v396 = vpop.permute.xlu0 %395
        %397 = vrot.lane.b32.xlu0 %v389, 19
        %v398 = vpop.permute.xlu0 %397
        %vm399 = vcmask 154624
        %v400 = vsel %vm399, %v394, %v396
        %v401 = vsel %vm399, %v396, %v398
        %v405 = vsel %vm399, 0.0, %v394
        %406 = vrot.lane.b32.xlu0 %v387, 18
        %v407 = vpop.permute.xlu0 %406
        %408 = vrot.lane.b32.xlu0 %v388, 18
        %v409 = vpop.permute.xlu0 %408
        %410 = vrot.lane.b32.xlu0 %v389, 18
        %v411 = vpop.permute.xlu0 %410
        %vm412 = vcmask 146432
        %v413 = vsel %vm412, %v407, %v409
        %v414 = vsel %vm412, %v409, %v411
        %v418 = vsel %vm412, 0.0, %v407
        %419 = vrot.lane.b32.xlu0 %v387, 17
        %v420 = vpop.permute.xlu0 %419
        %421 = vrot.lane.b32.xlu0 %v388, 17
        %v422 = vpop.permute.xlu0 %421
        %423 = vrot.lane.b32.xlu0 %v389, 17
        %v424 = vpop.permute.xlu0 %423
        %vm425 = vcmask 138240
        %v426 = vsel %vm425, %v420, %v422
        %v427 = vsel %vm425, %v422, %v424
        %v431 = vsel %vm425, 0.0, %v420
        %432 = vrot.lane.b32.xlu0 %v387, 1
        %v433 = vpop.permute.xlu0 %432
        %434 = vrot.lane.b32.xlu0 %v388, 1
        %v435 = vpop.permute.xlu0 %434
        %436 = vrot.lane.b32.xlu0 %v389, 1
        %v437 = vpop.permute.xlu0 %436
        %vm438 = vcmask 7168
        %v439 = vsel %vm438, %v433, %v435
        %v440 = vsel %vm438, %v435, %v437
        %v444 = vsel %vm438, 0.0, %v433
        %445 = vrot.lane.b32.xlu0 %v387, 127
        %v446 = vpop.permute.xlu0 %445
        %447 = vrot.lane.b32.xlu0 %v388, 127
        %v448 = vpop.permute.xlu0 %447
        %449 = vrot.lane.b32.xlu0 %v389, 127
        %v450 = vpop.permute.xlu0 %449
        %vm451 = vcmask 1039360
        %v452 = vsel %vm451, %v446, %v448
        %v453 = vsel %vm451, %v448, %v450
        %vm457 = vcmask 547840
        %v458 = vsel %vm457, %v450, 0.0
        %459 = vrot.lane.b32.xlu0 %v387, 111
        %v460 = vpop.permute.xlu0 %459
        %461 = vrot.lane.b32.xlu0 %v388, 111
        %v462 = vpop.permute.xlu0 %461
        %463 = vrot.lane.b32.xlu0 %v389, 111
        %v464 = vpop.permute.xlu0 %463
        %vm465 = vcmask 908288
        %v466 = vsel %vm465, %v460, %v462
        %v467 = vsel %vm465, %v462, %v464
        %vm471 = vcmask 416768
        %v472 = vsel %vm471, %v464, 0.0
        %473 = vrot.lane.b32.xlu0 %v387, 110
        %v474 = vpop.permute.xlu0 %473
        %475 = vrot.lane.b32.xlu0 %v388, 110
        %v476 = vpop.permute.xlu0 %475
        %477 = vrot.lane.b32.xlu0 %v389, 110
        %v478 = vpop.permute.xlu0 %477
        %vm479 = vcmask 900096
        %v480 = vsel %vm479, %v474, %v476
        %v481 = vsel %vm479, %v476, %v478
        %vm485 = vcmask 408576
        %v486 = vsel %vm485, %v478, 0.0
        %487 = vrot.lane.b32.xlu0 %v387, 109
        %v488 = vpop.permute.xlu0 %487
        %489 = vrot.lane.b32.xlu0 %v388, 109
        %v490 = vpop.permute.xlu0 %489
        %491 = vrot.lane.b32.xlu0 %v389, 109
        %v492 = vpop.permute.xlu0 %491
        %vm493 = vcmask 891904
        %v494 = vsel %vm493, %v488, %v490
        %v495 = vsel %vm493, %v490, %v492
        %vm499 = vcmask 400384
        %v500 = vsel %vm499, %v492, 0.0
        %v501 = vpack.c.bf16 %v418, %v405
        %v502 = vpack.c.bf16 %v413, %v400
        %v503 = vpack.c.bf16 %v414, %v401
        %v504 = vpack.c.bf16 %v444, %v431
        %v505 = vpack.c.bf16 %v439, %v426
        %v506 = vpack.c.bf16 %v440, %v427
        %v507 = vpack.c.bf16 %v452, %v387
        %v508 = vpack.c.bf16 %v453, %v388
        %v509 = vpack.c.bf16 %v458, %v389
        %v510 = vpack.c.bf16 %v480, %v466
        %v511 = vpack.c.bf16 %v481, %v467
        %v512 = vpack.c.bf16 %v486, %v472
        %v513 = vpack.c.bf16 %v494, %v494
        %v514 = vpack.c.bf16 %v495, %v495
        %v515 = vpack.c.bf16 %v500, %v500
        %v516 = vld [vmem:[%s1] sm:$0xf]
        %v517 = vld [vmem:[%s4] sm:$0xff]
        %519 = vset.pattern.permute.xlu0 0
        %520 = vperm.xlu0 %519, %v517
        %v521 = vpop.permute.xlu0 %520
        %vm523 = vcmask 588800
        %v525 = vsel %vm523, %v516, 0
        %vm527 = vcmask 1043456
        %v529 = vsel %vm527, %v513, 0
        %v532 = vsel %vm527, %v514, 0
        %v535 = vsel %vm527, %v515, 0
        %537 = vmatprep.subr.bf16.mxu0 %v502
        %538 = vmatpush1.bf16.msra.mxu0 %v501
        %539 = vmatprep.subr.bf16.mxu0 %v505
        %540 = vmatpush1.bf16.msra.mxu0 %v504
        %541 = vmatprep.subr.bf16.mxu0 %v508
        %542 = vmatpush1.bf16.msra.mxu0 %v507
        %543 = vmatprep.subr.bf16.mxu0 %v511
        %544 = vmatpush1.bf16.msra.mxu0 %v510
        %545 = vmatprep.subr.bf16.mxu0 %v532
        %546 = vmatpush1.bf16.msra.mxu0 %v529
        %547 = vmatprep.subr.bf16.mxu0 0
        %548 = vmatpush1.bf16.msra.mxu0 0
        %549 = vmatprep.subr.bf16.mxu0 0
        %550 = vmatpush1.bf16.msra.mxu0 0
        %551 = vmatprep.subr.bf16.mxu0 0
        %552 = vmatpush1.bf16.msra.mxu0 0
        %553 = vmatprep.subr.bf16.mxu0 0
        %554 = vmatpush1.bf16.msra.mxu0 0
        %555 = vmatprep.subr.bf16.mxu0 0
        %556 = vmatpush1.bf16.msra.mxu0 0
        %557 = vmatprep.subr.bf16.mxu0 0
        %558 = vmatpush1.bf16.msra.mxu0 0
        %559 = vmatprep.subr.bf16.mxu0 0
        %560 = vmatpush1.bf16.msra.mxu0 0
        %561 = vmatprep.subr.bf16.mxu0 0
        %562 = vmatpush1.bf16.msra.mxu0 0
        %563 = vmatprep.subr.bf16.mxu0 0
        %564 = vmatpush1.bf16.msra.mxu0 0
        %565 = vmatprep.subr.bf16.mxu0 0
        %566 = vmatpush1.bf16.msra.mxu0 0
        %567 = vmatprep.subr.bf16.mxu0 0
        %568 = vmatpush1.bf16.msra.mxu0 0
        %569 = vmatprep.mubr.bf16.mxu0 0
        %570 = vmatmul.mubr.bf16.gmra.mrb[0].mxu0 %v525
        %v571 = vpop.f32.mrb[0].mxu0
        %v572 = vadd.f32 %v521, %v571
        %v573 = vpop.f32.mrb[0].mxu0
        %v574 = vadd.f32 %v521, %v573
        %v575 = vpop.f32.mrb[0].mxu0
        %v576 = vpop.f32.mrb[0].mxu0
        %577 = vdwg.mxu0
        %578 = vmatprep.subr.bf16.mxu0 0
        %579 = vmatpush1.bf16.msra.mxu0 %v503
        %580 = vmatprep.subr.bf16.mxu0 0
        %581 = vmatpush1.bf16.msra.mxu0 %v506
        %582 = vmatprep.subr.bf16.mxu0 0
        %583 = vmatpush1.bf16.msra.mxu0 %v509
        %584 = vmatprep.subr.bf16.mxu0 0
        %585 = vmatpush1.bf16.msra.mxu0 %v512
        %586 = vmatprep.subr.bf16.mxu0 0
        %587 = vmatpush1.bf16.msra.mxu0 %v535
        %588 = vmatprep.subr.bf16.mxu0 0
        %589 = vmatpush1.bf16.msra.mxu0 0
        %590 = vmatprep.subr.bf16.mxu0 0
        %591 = vmatpush1.bf16.msra.mxu0 0
        %592 = vmatprep.subr.bf16.mxu0 0
        %593 = vmatpush1.bf16.msra.mxu0 0
        %594 = vmatprep.subr.bf16.mxu0 0
        %595 = vmatpush1.bf16.msra.mxu0 0
        %596 = vmatprep.subr.bf16.mxu0 0
        %597 = vmatpush1.bf16.msra.mxu0 0
        %598 = vmatprep.subr.bf16.mxu0 0
        %599 = vmatpush1.bf16.msra.mxu0 0
        %600 = vmatprep.subr.bf16.mxu0 0
        %601 = vmatpush1.bf16.msra.mxu0 0
        %602 = vmatprep.subr.bf16.mxu0 0
        %603 = vmatpush1.bf16.msra.mxu0 0
        %604 = vmatprep.subr.bf16.mxu0 0
        %605 = vmatpush1.bf16.msra.mxu0 0
        %606 = vmatprep.subr.bf16.mxu0 0
        %607 = vmatpush1.bf16.msra.mxu0 0
        %608 = vmatprep.subr.bf16.mxu0 0
        %609 = vmatpush1.bf16.msra.mxu0 0
        %610 = vmatprep.mubr.bf16.mxu0 0
        %611 = vmatmul.mubr.bf16.gmra.mrb[0].mxu0 %v525
        %v612 = vpop.f32.mrb[0].mxu0
        %v613 = vadd.f32 %v521, %v612
        %v614 = vpop.f32.mrb[0].mxu0
        %v615 = vpop.f32.mrb[0].mxu0
        %v616 = vpop.f32.mrb[0].mxu0
        %617 = vdwg.mxu0
        %vm618 = vcmp.ge.f32.partialorder %v572, 0.0
        %vm619 = vcmp.ge.f32.partialorder %v574, 0.0
        %vm620 = vcmp.ge.f32.partialorder %v613, 0.0
        %v621 = vld [vmem:[%s7] sm:$0xff]
        %623 = vset.pattern.permute.xlu0 0
        %624 = vperm.xlu0 %623, %v621
        %v625 = vpop.permute.xlu0 %624
        %v627 = vmul.f32 %v572, %v625
        %v628 = vmul.f32 %v574, %v625
        %v629 = vmul.f32 %v613, %v625
        %v630 = vsel %vm618, %v572, %v627
        %v631 = vsel %vm619, %v574, %v628
        %v632 = vsel %vm620, %v613, %v629
        %v634 = vlaneseq
        %v635 = vshrl.u32 %v634, 7
        %v636 = vsub.s32 0, %v635
        %v637 = vrot.slane %v386, %v636
        %v638 = vlaneseq
        %v639 = vshrl.u32 %v638, 7
        %v640 = vsub.s32 1, %v639
        %v641 = vrot.slane %v386, %v640
        %v642 = vlaneseq
        %v643 = vshrl.u32 %v642, 7
        %v644 = vsub.s32 2, %v643
        %v645 = vrot.slane %v386, %v644
        %v649 = vmul.f32 %v630, %v637
        %v650 = vmul.f32 %v631, %v641
        %v651 = vmul.f32 %v632, %v645
        %655 = vrot.lane.b32.xlu0 %v649, 19
        %v656 = vpop.permute.xlu0 %655
        %657 = vrot.lane.b32.xlu0 %v650, 19
        %v658 = vpop.permute.xlu0 %657
        %659 = vrot.lane.b32.xlu0 %v651, 19
        %v660 = vpop.permute.xlu0 %659
        %v661 = vsel %vm399, %v656, %v658
        %v662 = vsel %vm399, %v658, %v660
        %v666 = vsel %vm399, 0.0, %v656
        %667 = vrot.lane.b32.xlu0 %v649, 18
        %v668 = vpop.permute.xlu0 %667
        %669 = vrot.lane.b32.xlu0 %v650, 18
        %v670 = vpop.permute.xlu0 %669
        %671 = vrot.lane.b32.xlu0 %v651, 18
        %v672 = vpop.permute.xlu0 %671
        %v673 = vsel %vm412, %v668, %v670
        %v674 = vsel %vm412, %v670, %v672
        %v678 = vsel %vm412, 0.0, %v668
        %679 = vrot.lane.b32.xlu0 %v649, 17
        %v680 = vpop.permute.xlu0 %679
        %681 = vrot.lane.b32.xlu0 %v650, 17
        %v682 = vpop.permute.xlu0 %681
        %683 = vrot.lane.b32.xlu0 %v651, 17
        %v684 = vpop.permute.xlu0 %683
        %v685 = vsel %vm425, %v680, %v682
        %v686 = vsel %vm425, %v682, %v684
        %v690 = vsel %vm425, 0.0, %v680
        %691 = vrot.lane.b32.xlu0 %v649, 1
        %v692 = vpop.permute.xlu0 %691
        %693 = vrot.lane.b32.xlu0 %v650, 1
        %v694 = vpop.permute.xlu0 %693
        %695 = vrot.lane.b32.xlu0 %v651, 1
        %v696 = vpop.permute.xlu0 %695
        %v697 = vsel %vm438, %v692, %v694
        %v698 = vsel %vm438, %v694, %v696
        %v702 = vsel %vm438, 0.0, %v692
        %703 = vrot.lane.b32.xlu0 %v649, 127
        %v704 = vpop.permute.xlu0 %703
        %705 = vrot.lane.b32.xlu0 %v650, 127
        %v706 = vpop.permute.xlu0 %705
        %707 = vrot.lane.b32.xlu0 %v651, 127
        %v708 = vpop.permute.xlu0 %707
        %v709 = vsel %vm451, %v704, %v706
        %v710 = vsel %vm451, %v706, %v708
        %v714 = vsel %vm457, %v708, 0.0
        %715 = vrot.lane.b32.xlu0 %v649, 111
        %v716 = vpop.permute.xlu0 %715
        %717 = vrot.lane.b32.xlu0 %v650, 111
        %v718 = vpop.permute.xlu0 %717
        %719 = vrot.lane.b32.xlu0 %v651, 111
        %v720 = vpop.permute.xlu0 %719
        %v721 = vsel %vm465, %v716, %v718
        %v722 = vsel %vm465, %v718, %v720
        %v726 = vsel %vm471, %v720, 0.0
        %727 = vrot.lane.b32.xlu0 %v649, 110
        %v728 = vpop.permute.xlu0 %727
        %729 = vrot.lane.b32.xlu0 %v650, 110
        %v730 = vpop.permute.xlu0 %729
        %731 = vrot.lane.b32.xlu0 %v651, 110
        %v732 = vpop.permute.xlu0 %731
        %v733 = vsel %vm479, %v728, %v730
        %v734 = vsel %vm479, %v730, %v732
        %v738 = vsel %vm485, %v732, 0.0
        %739 = vrot.lane.b32.xlu0 %v649, 109
        %v740 = vpop.permute.xlu0 %739
        %741 = vrot.lane.b32.xlu0 %v650, 109
        %v742 = vpop.permute.xlu0 %741
        %743 = vrot.lane.b32.xlu0 %v651, 109
        %v744 = vpop.permute.xlu0 %743
        %v745 = vsel %vm493, %v740, %v742
        %v746 = vsel %vm493, %v742, %v744
        %v750 = vsel %vm499, %v744, 0.0
        %v751 = vpack.c.bf16 %v678, %v666
        %v752 = vpack.c.bf16 %v673, %v661
        %v753 = vpack.c.bf16 %v674, %v662
        %v754 = vpack.c.bf16 %v702, %v690
        %v755 = vpack.c.bf16 %v697, %v685
        %v756 = vpack.c.bf16 %v698, %v686
        %v757 = vpack.c.bf16 %v709, %v649
        %v758 = vpack.c.bf16 %v710, %v650
        %v759 = vpack.c.bf16 %v714, %v651
        %v760 = vpack.c.bf16 %v733, %v721
        %v761 = vpack.c.bf16 %v734, %v722
        %v762 = vpack.c.bf16 %v738, %v726
        %v763 = vpack.c.bf16 %v745, %v745
        %v764 = vpack.c.bf16 %v746, %v746
        %v765 = vpack.c.bf16 %v750, %v750
        %v766 = vld [vmem:[%s2] sm:$0xf]
        %v767 = vld [vmem:[%s5] sm:$0xff]
        %769 = vset.pattern.permute.xlu0 0
        %770 = vperm.xlu0 %769, %v767
        %v771 = vpop.permute.xlu0 %770
        %v774 = vsel %vm523, %v766, 0
        %v777 = vsel %vm527, %v763, 0
        %v780 = vsel %vm527, %v764, 0
        %v783 = vsel %vm527, %v765, 0
        %785 = vmatprep.subr.bf16.mxu0 %v752
        %786 = vmatpush1.bf16.msra.mxu0 %v751
        %787 = vmatprep.subr.bf16.mxu0 %v755
        %788 = vmatpush1.bf16.msra.mxu0 %v754
        %789 = vmatprep.subr.bf16.mxu0 %v758
        %790 = vmatpush1.bf16.msra.mxu0 %v757
        %791 = vmatprep.subr.bf16.mxu0 %v761
        %792 = vmatpush1.bf16.msra.mxu0 %v760
        %793 = vmatprep.subr.bf16.mxu0 %v780
        %794 = vmatpush1.bf16.msra.mxu0 %v777
        %795 = vmatprep.subr.bf16.mxu0 0
        %796 = vmatpush1.bf16.msra.mxu0 0
        %797 = vmatprep.subr.bf16.mxu0 0
        %798 = vmatpush1.bf16.msra.mxu0 0
        %799 = vmatprep.subr.bf16.mxu0 0
        %800 = vmatpush1.bf16.msra.mxu0 0
        %801 = vmatprep.subr.bf16.mxu0 0
        %802 = vmatpush1.bf16.msra.mxu0 0
        %803 = vmatprep.subr.bf16.mxu0 0
        %804 = vmatpush1.bf16.msra.mxu0 0
        %805 = vmatprep.subr.bf16.mxu0 0
        %806 = vmatpush1.bf16.msra.mxu0 0
        %807 = vmatprep.subr.bf16.mxu0 0
        %808 = vmatpush1.bf16.msra.mxu0 0
        %809 = vmatprep.subr.bf16.mxu0 0
        %810 = vmatpush1.bf16.msra.mxu0 0
        %811 = vmatprep.subr.bf16.mxu0 0
        %812 = vmatpush1.bf16.msra.mxu0 0
        %813 = vmatprep.subr.bf16.mxu0 0
        %814 = vmatpush1.bf16.msra.mxu0 0
        %815 = vmatprep.subr.bf16.mxu0 0
        %816 = vmatpush1.bf16.msra.mxu0 0
        %817 = vmatprep.mubr.bf16.mxu0 0
        %818 = vmatmul.mubr.bf16.gmra.mrb[0].mxu0 %v774
        %v819 = vpop.f32.mrb[0].mxu0
        %v820 = vadd.f32 %v771, %v819
        %v821 = vpop.f32.mrb[0].mxu0
        %v822 = vadd.f32 %v771, %v821
        %v823 = vpop.f32.mrb[0].mxu0
        %v824 = vpop.f32.mrb[0].mxu0
        %825 = vdwg.mxu0
        %826 = vmatprep.subr.bf16.mxu0 0
        %827 = vmatpush1.bf16.msra.mxu0 %v753
        %828 = vmatprep.subr.bf16.mxu0 0
        %829 = vmatpush1.bf16.msra.mxu0 %v756
        %830 = vmatprep.subr.bf16.mxu0 0
        %831 = vmatpush1.bf16.msra.mxu0 %v759
        %832 = vmatprep.subr.bf16.mxu0 0
        %833 = vmatpush1.bf16.msra.mxu0 %v762
        %834 = vmatprep.subr.bf16.mxu0 0
        %835 = vmatpush1.bf16.msra.mxu0 %v783
        %836 = vmatprep.subr.bf16.mxu0 0
        %837 = vmatpush1.bf16.msra.mxu0 0
        %838 = vmatprep.subr.bf16.mxu0 0
        %839 = vmatpush1.bf16.msra.mxu0 0
        %840 = vmatprep.subr.bf16.mxu0 0
        %841 = vmatpush1.bf16.msra.mxu0 0
        %842 = vmatprep.subr.bf16.mxu0 0
        %843 = vmatpush1.bf16.msra.mxu0 0
        %844 = vmatprep.subr.bf16.mxu0 0
        %845 = vmatpush1.bf16.msra.mxu0 0
        %846 = vmatprep.subr.bf16.mxu0 0
        %847 = vmatpush1.bf16.msra.mxu0 0
        %848 = vmatprep.subr.bf16.mxu0 0
        %849 = vmatpush1.bf16.msra.mxu0 0
        %850 = vmatprep.subr.bf16.mxu0 0
        %851 = vmatpush1.bf16.msra.mxu0 0
        %852 = vmatprep.subr.bf16.mxu0 0
        %853 = vmatpush1.bf16.msra.mxu0 0
        %854 = vmatprep.subr.bf16.mxu0 0
        %855 = vmatpush1.bf16.msra.mxu0 0
        %856 = vmatprep.subr.bf16.mxu0 0
        %857 = vmatpush1.bf16.msra.mxu0 0
        %858 = vmatprep.mubr.bf16.mxu0 0
        %859 = vmatmul.mubr.bf16.gmra.mrb[0].mxu0 %v774
        %v860 = vpop.f32.mrb[0].mxu0
        %v861 = vadd.f32 %v771, %v860
        %v862 = vpop.f32.mrb[0].mxu0
        %v863 = vpop.f32.mrb[0].mxu0
        %v864 = vpop.f32.mrb[0].mxu0
        %865 = vdwg.mxu0
        %vm866 = vcmp.ge.f32.partialorder %v820, 0.0
        %vm867 = vcmp.ge.f32.partialorder %v822, 0.0
        %vm868 = vcmp.ge.f32.partialorder %v861, 0.0
        %v869 = vld [vmem:[%s8] sm:$0xff]
        %871 = vset.pattern.permute.xlu0 0
        %872 = vperm.xlu0 %871, %v869
        %v873 = vpop.permute.xlu0 %872
        %v875 = vmul.f32 %v820, %v873
        %v876 = vmul.f32 %v822, %v873
        %v877 = vmul.f32 %v861, %v873
        %v878 = vsel %vm866, %v820, %v875
        %v879 = vsel %vm867, %v822, %v876
        %v880 = vsel %vm868, %v861, %v877
        %v881 = vmul.f32 %v878, %v637
        %v882 = vmul.f32 %v879, %v641
        %v883 = vmul.f32 %v880, %v645
        %887 = vrot.lane.b32.xlu0 %v881, 19
        %v888 = vpop.permute.xlu0 %887
        %889 = vrot.lane.b32.xlu0 %v882, 19
        %v890 = vpop.permute.xlu0 %889
        %891 = vrot.lane.b32.xlu0 %v883, 19
        %v892 = vpop.permute.xlu0 %891
        %v893 = vsel %vm399, %v888, %v890
        %v894 = vsel %vm399, %v890, %v892
        %v898 = vsel %vm399, 0.0, %v888
        %899 = vrot.lane.b32.xlu0 %v881, 18
        %v900 = vpop.permute.xlu0 %899
        %901 = vrot.lane.b32.xlu0 %v882, 18
        %v902 = vpop.permute.xlu0 %901
        %903 = vrot.lane.b32.xlu0 %v883, 18
        %v904 = vpop.permute.xlu0 %903
        %v905 = vsel %vm412, %v900, %v902
        %v906 = vsel %vm412, %v902, %v904
        %v910 = vsel %vm412, 0.0, %v900
        %911 = vrot.lane.b32.xlu0 %v881, 17
        %v912 = vpop.permute.xlu0 %911
        %913 = vrot.lane.b32.xlu0 %v882, 17
        %v914 = vpop.permute.xlu0 %913
        %915 = vrot.lane.b32.xlu0 %v883, 17
        %v916 = vpop.permute.xlu0 %915
        %v917 = vsel %vm425, %v912, %v914
        %v918 = vsel %vm425, %v914, %v916
        %v922 = vsel %vm425, 0.0, %v912
        %923 = vrot.lane.b32.xlu0 %v881, 1
        %v924 = vpop.permute.xlu0 %923
        %925 = vrot.lane.b32.xlu0 %v882, 1
        %v926 = vpop.permute.xlu0 %925
        %927 = vrot.lane.b32.xlu0 %v883, 1
        %v928 = vpop.permute.xlu0 %927
        %v929 = vsel %vm438, %v924, %v926
        %v930 = vsel %vm438, %v926, %v928
        %v934 = vsel %vm438, 0.0, %v924
        %935 = vrot.lane.b32.xlu0 %v881, 127
        %v936 = vpop.permute.xlu0 %935
        %937 = vrot.lane.b32.xlu0 %v882, 127
        %v938 = vpop.permute.xlu0 %937
        %939 = vrot.lane.b32.xlu0 %v883, 127
        %v940 = vpop.permute.xlu0 %939
        %v941 = vsel %vm451, %v936, %v938
        %v942 = vsel %vm451, %v938, %v940
        %v946 = vsel %vm457, %v940, 0.0
        %947 = vrot.lane.b32.xlu0 %v881, 111
        %v948 = vpop.permute.xlu0 %947
        %949 = vrot.lane.b32.xlu0 %v882, 111
        %v950 = vpop.permute.xlu0 %949
        %951 = vrot.lane.b32.xlu0 %v883, 111
        %v952 = vpop.permute.xlu0 %951
        %v953 = vsel %vm465, %v948, %v950
        %v954 = vsel %vm465, %v950, %v952
        %v958 = vsel %vm471, %v952, 0.0
        %959 = vrot.lane.b32.xlu0 %v881, 110
        %v960 = vpop.permute.xlu0 %959
        %961 = vrot.lane.b32.xlu0 %v882, 110
        %v962 = vpop.permute.xlu0 %961
        %963 = vrot.lane.b32.xlu0 %v883, 110
        %v964 = vpop.permute.xlu0 %963
        %v965 = vsel %vm479, %v960, %v962
        %v966 = vsel %vm479, %v962, %v964
        %v970 = vsel %vm485, %v964, 0.0
        %971 = vrot.lane.b32.xlu0 %v881, 109
        %v972 = vpop.permute.xlu0 %971
        %973 = vrot.lane.b32.xlu0 %v882, 109
        %v974 = vpop.permute.xlu0 %973
        %975 = vrot.lane.b32.xlu0 %v883, 109
        %v976 = vpop.permute.xlu0 %975
        %v977 = vsel %vm493, %v972, %v974
        %v978 = vsel %vm493, %v974, %v976
        %v982 = vsel %vm499, %v976, 0.0
        %v983 = vpack.c.bf16 %v910, %v898
        %v984 = vpack.c.bf16 %v905, %v893
        %v985 = vpack.c.bf16 %v906, %v894
        %v986 = vpack.c.bf16 %v934, %v922
        %v987 = vpack.c.bf16 %v929, %v917
        %v988 = vpack.c.bf16 %v930, %v918
        %v989 = vpack.c.bf16 %v941, %v881
        %v990 = vpack.c.bf16 %v942, %v882
        %v991 = vpack.c.bf16 %v946, %v883
        %v992 = vpack.c.bf16 %v965, %v953
        %v993 = vpack.c.bf16 %v966, %v954
        %v994 = vpack.c.bf16 %v970, %v958
        %v995 = vpack.c.bf16 %v977, %v977
        %v996 = vpack.c.bf16 %v978, %v978
        %v997 = vpack.c.bf16 %v982, %v982
        %v998 = vld [vmem:[%s3] sm:$0xf]
        %v999 = vld [vmem:[%s6] sm:$0xff]
        %1001 = vset.pattern.permute.xlu0 0
        %1002 = vperm.xlu0 %1001, %v999
        %v1003 = vpop.permute.xlu0 %1002
        %v1006 = vsel %vm523, %v998, 0
        %v1009 = vsel %vm527, %v995, 0
        %v1012 = vsel %vm527, %v996, 0
        %v1015 = vsel %vm527, %v997, 0
        %1017 = vmatprep.subr.bf16.mxu0 %v984
        %1018 = vmatpush1.bf16.msra.mxu0 %v983
        %1019 = vmatprep.subr.bf16.mxu0 %v987
        %1020 = vmatpush1.bf16.msra.mxu0 %v986
        %1021 = vmatprep.subr.bf16.mxu0 %v990
        %1022 = vmatpush1.bf16.msra.mxu0 %v989
        %1023 = vmatprep.subr.bf16.mxu0 %v993
        %1024 = vmatpush1.bf16.msra.mxu0 %v992
        %1025 = vmatprep.subr.bf16.mxu0 %v1012
        %1026 = vmatpush1.bf16.msra.mxu0 %v1009
        %1027 = vmatprep.subr.bf16.mxu0 0
        %1028 = vmatpush1.bf16.msra.mxu0 0
        %1029 = vmatprep.subr.bf16.mxu0 0
        %1030 = vmatpush1.bf16.msra.mxu0 0
        %1031 = vmatprep.subr.bf16.mxu0 0
        %1032 = vmatpush1.bf16.msra.mxu0 0
        %1033 = vmatprep.subr.bf16.mxu0 0
        %1034 = vmatpush1.bf16.msra.mxu0 0
        %1035 = vmatprep.subr.bf16.mxu0 0
        %1036 = vmatpush1.bf16.msra.mxu0 0
        %1037 = vmatprep.subr.bf16.mxu0 0
        %1038 = vmatpush1.bf16.msra.mxu0 0
        %1039 = vmatprep.subr.bf16.mxu0 0
        %1040 = vmatpush1.bf16.msra.mxu0 0
        %1041 = vmatprep.subr.bf16.mxu0 0
        %1042 = vmatpush1.bf16.msra.mxu0 0
        %1043 = vmatprep.subr.bf16.mxu0 0
        %1044 = vmatpush1.bf16.msra.mxu0 0
        %1045 = vmatprep.subr.bf16.mxu0 0
        %1046 = vmatpush1.bf16.msra.mxu0 0
        %1047 = vmatprep.subr.bf16.mxu0 0
        %1048 = vmatpush1.bf16.msra.mxu0 0
        %1049 = vmatprep.mubr.bf16.mxu0 0
        %1050 = vmatmul.mubr.bf16.gmra.mrb[0].mxu0 %v1006
        %v1051 = vpop.f32.mrb[0].mxu0
        %v1052 = vadd.f32 %v1003, %v1051
        %v1053 = vpop.f32.mrb[0].mxu0
        %v1054 = vadd.f32 %v1003, %v1053
        %v1055 = vpop.f32.mrb[0].mxu0
        %v1056 = vpop.f32.mrb[0].mxu0
        %1057 = vdwg.mxu0
        %1058 = vmatprep.subr.bf16.mxu0 0
        %1059 = vmatpush1.bf16.msra.mxu0 %v985
        %1060 = vmatprep.subr.bf16.mxu0 0
        %1061 = vmatpush1.bf16.msra.mxu0 %v988
        %1062 = vmatprep.subr.bf16.mxu0 0
        %1063 = vmatpush1.bf16.msra.mxu0 %v991
        %1064 = vmatprep.subr.bf16.mxu0 0
        %1065 = vmatpush1.bf16.msra.mxu0 %v994
        %1066 = vmatprep.subr.bf16.mxu0 0
        %1067 = vmatpush1.bf16.msra.mxu0 %v1015
        %1068 = vmatprep.subr.bf16.mxu0 0
        %1069 = vmatpush1.bf16.msra.mxu0 0
        %1070 = vmatprep.subr.bf16.mxu0 0
        %1071 = vmatpush1.bf16.msra.mxu0 0
        %1072 = vmatprep.subr.bf16.mxu0 0
        %1073 = vmatpush1.bf16.msra.mxu0 0
        %1074 = vmatprep.subr.bf16.mxu0 0
        %1075 = vmatpush1.bf16.msra.mxu0 0
        %1076 = vmatprep.subr.bf16.mxu0 0
        %1077 = vmatpush1.bf16.msra.mxu0 0
        %1078 = vmatprep.subr.bf16.mxu0 0
        %1079 = vmatpush1.bf16.msra.mxu0 0
        %1080 = vmatprep.subr.bf16.mxu0 0
        %1081 = vmatpush1.bf16.msra.mxu0 0
        %1082 = vmatprep.subr.bf16.mxu0 0
        %1083 = vmatpush1.bf16.msra.mxu0 0
        %1084 = vmatprep.subr.bf16.mxu0 0
        %1085 = vmatpush1.bf16.msra.mxu0 0
        %1086 = vmatprep.subr.bf16.mxu0 0
        %1087 = vmatpush1.bf16.msra.mxu0 0
        %1088 = vmatprep.subr.bf16.mxu0 0
        %1089 = vmatpush1.bf16.msra.mxu0 0
        %1090 = vmatprep.mubr.bf16.mxu0 0
        %1091 = vmatmul.mubr.bf16.gmra.mrb[0].mxu0 %v1006
        %v1092 = vpop.f32.mrb[0].mxu0
        %v1093 = vadd.f32 %v1003, %v1092
        %v1094 = vpop.f32.mrb[0].mxu0
        %v1095 = vpop.f32.mrb[0].mxu0
        %v1096 = vpop.f32.mrb[0].mxu0
        %1097 = vdwg.mxu0
        %vm1098 = vcmp.ge.f32.partialorder %v1052, 0.0
        %vm1099 = vcmp.ge.f32.partialorder %v1054, 0.0
        %vm1100 = vcmp.ge.f32.partialorder %v1093, 0.0
        %v1101 = vld [vmem:[%s9] sm:$0xff]
        %1103 = vset.pattern.permute.xlu0 0
        %1104 = vperm.xlu0 %1103, %v1101
        %v1105 = vpop.permute.xlu0 %1104
        %v1107 = vmul.f32 %v1052, %v1105
        %v1108 = vmul.f32 %v1054, %v1105
        %v1109 = vmul.f32 %v1093, %v1105
        %v1110 = vsel %vm1098, %v1052, %v1107
        %v1111 = vsel %vm1099, %v1054, %v1108
        %v1112 = vsel %vm1100, %v1093, %v1109
        %v1113 = vmul.f32 %v1110, %v637
        %v1114 = vmul.f32 %v1111, %v641
        %v1115 = vmul.f32 %v1112, %v645
        %1116 = vst [vmem:[%s379] sm:$0xff] %v649
        %1117 = vst [vmem:[%s379 + $0x8] sm:$0xff] %v650
        %vm1118 = vcmask 556032
        %1119 = vst.msk [vmem:[%s379 + $0x10] sm:$0xff] %vm1118, %v651
        %1120 = vst [vmem:[%s379 + $0x18] sm:$0xff] %v881
        %1121 = vst [vmem:[%s379 + $0x20] sm:$0xff] %v882
        %1122 = vst.msk [vmem:[%s379 + $0x28] sm:$0xff] %vm1118, %v883
        %1123 = vst [vmem:[%s379 + $0x30] sm:$0xff] %v1113
        %1124 = vst [vmem:[%s379 + $0x38] sm:$0xff] %v1114
        %1125 = vst.msk [vmem:[%s379 + $0x40] sm:$0xff] %vm1118, %v1115
        %s1126 = sand.u32 %s269, 1
        %s1127 = scalar_lea.sflag [#allocation3], %s1126
        %s1128 = sand.u32 %s269, 1
        %s1129 = smul.addr %s1128, 72
        %s1130 = scalar_lea.vmem [#allocation2], %s1129
        // Predicated region
        $region65: #{tpu_custom_call.1} parent=63 // pred_check
          %p1131 = pneg %p279
        $region66: #{tpu_custom_call.1} parent=63 // pred_check_branch
          %1133 = sbr.rel (%p1131) target = $region68
        $region67: #{tpu_custom_call.1} parent=63 // pred_region
          %s1135 = ssub.s32 1152, 1152
          %1136 = vsyncadd %s1127, %s1135
          %s1137 = smul.addr %s25, 9
          %s1138 = smul.addr %s1137, 128
          %s1139 = scalar_lea.hbm %s11, %s1138
          %s1140 = sshll.u32 %s1130, 4
          %s1141 = int_to_ptr.vmem [resolvable:$true] %s1140
          %1146 = dma.vmem_to_hbm [thread:$0]  %s1141, 1152, %s1139, %s1127, 384, 384, 24
        $region68: #{tpu_custom_call.1} parent=63 // pred_fallthru
          _
      $region64: #{tpu_custom_call.1} parent=5 // pred_fallthru
        _
      %p1147 = scmp.le.s32.totalorder 2, %s20
      // Predicated region
      $region69: #{tpu_custom_call.1} parent=5 // pred_check
        %p1148 = pneg %p1147
      $region70: #{tpu_custom_call.1} parent=5 // pred_check_branch
        %1150 = sbr.rel (%p1148) target = $region72
      $region71: #{tpu_custom_call.1} parent=5 // pred_region
        %s1151 = ssub.s32 %s20, 2
        // Predicated region
        $region73: #{tpu_custom_call.1} parent=71 // pred_check
          %p1152 = pneg %p285
        $region74: #{tpu_custom_call.1} parent=71 // pred_check_branch
          %1154 = sbr.rel (%p1152) target = $region76
        $region75: #{tpu_custom_call.1} parent=71 // pred_region
          %s1155 = sand.u32 %s270, 1
          %s1156 = scalar_lea.sflag [#allocation3], %s1155
          %s1157 = sand.u32 %s270, 1
          %s1158 = smul.addr %s1157, 72
          %s1159 = scalar_lea.vmem [#allocation2], %s1158
          %1160 = dma.done %s1156, 1152
        $region76: #{tpu_custom_call.1} parent=71 // pred_fallthru
          _
      $region72: #{tpu_custom_call.1} parent=5 // pred_fallthru
        _
    $region6: #{tpu_custom_call.1} parent=1 // loop_footer
      %s24 = sadd.s32 1, %s20
    $region7: #{tpu_custom_call.1} parent=1 // loop_footer_branch
      %19 = sbr.rel target = $region3
    $region8: #{tpu_custom_call.1} parent=1 // loop_exit
      _
    %1161 = vsyncpa [#allocation3], 1
    %s1162 = scalar_lea.sflag [#allocation3], 1
    %1163 = vsyncpa %s1162, 1

</llo_original>
